<compile_context>
chip_gen: v5e
topology: v5e:2x2
jax: 0.10.0
libtpu: 0.0.40
codegen_flags: <defaults>
</compile_context>

<pallas_src>
import functools

import jax
import jax.numpy as jnp
from jax import lax
from jax.experimental import pallas as pl
from jax.experimental.pallas import tpu as pltpu

GL = 128   # packed gate lane group (r | z | n live in one 128-lane block)
HP = 128   # padded hidden size (MXU contraction dim)
OP = 128   # lane-dense head output width


def recognition_rnn_kernel(x_ref, wih_ref, whh_ref, bgi_ref, bhn_ref,
                           wout_ref, bout_ref, out_ref, gi_ref, h_ref,
                           *, hidden, chunk, total_steps):
    """One time-chunk of the GRU recurrence (+ hid2lat head on the last chunk).

    Packed gate layout (GL = 128 lanes): r -> [0,H), z -> [H,2H), n -> [2H,3H).
      x_ref    (chunk*BP, obs)  f32   this chunk's observations (batch padded)
      wih_ref  (obs, GL)        f32   W_ih^T, gate-packed columns (VPU path)
      whh_ref  (HP, GL)         bf16  W_hh^T, gate-packed columns, rows >= H zero
      bgi_ref  (1, GL)          f32   b_ih+b_hh for r,z; b_ih for n (packed)
      bhn_ref  (1, GL)          f32   b_hh(n) placed at the n lane group
      wout_ref (HP, OP)         bf16  hid2lat weight^T, rows >= H zero
      bout_ref (1, OP)          f32
      out_ref  (BP, OP)         f32   [mean | logvar | 0-pad], lane dense
      gi_ref   (chunk*BP, GL)   f32   scratch: hoisted input projection
      h_ref    (BP, HP)         f32   scratch: hidden state, persists per chunk
    """
    c = pl.program_id(0)
    H = hidden
    Bp = h_ref.shape[0]
    Gl = whh_ref.shape[1]
    obs = x_ref.shape[1]

    @pl.when(c == 0)
    def _init():
        h_ref[...] = jnp.zeros_like(h_ref)

    # ---- Input projection for the whole chunk, hoisted off the serial chain.
    # K = obs is tiny, so use VPU broadcast mul/adds instead of an MXU pass.
    gi = x_ref[:, 0:1] * wih_ref[0:1, :] + bgi_ref[...]
    for k in range(1, obs):
        gi = gi + x_ref[:, k:k + 1] * wih_ref[k:k + 1, :]
    gi_ref[...] = gi

    # Hoisted out of the step loop (JAX does not CSE broadcast_in_dim).
    bhn_b = jnp.broadcast_to(bhn_ref[...], (Bp, Gl))
    whh = whh_ref[...]                               # bf16 (HP, GL)

    def step(t, h):
        # (BP, GL) slice of the hoisted projection, sublane aligned.
        gi_t = gi_ref[pl.ds(pl.multiple_of(t * Bp, Bp), Bp), :]
        # Single gate-packed MXU push per serial step (bf16 x bf16 -> f32 acc).
        gh = jnp.dot(h.astype(jnp.bfloat16), whh,
                     preferred_element_type=jnp.float32)
        rz = jax.nn.sigmoid(gi_t + gh)               # r @ [0,H), z @ [H,2H)
        # Move r onto the n lane group: n = tanh(gi_n + r*(gh_n + b_hn)).
        r_at_n = pltpu.roll(rz, shift=2 * H, axis=1)
        nt = jnp.tanh(gi_t + r_at_n * (gh + bhn_b))  # n @ [2H,3H)
        # Bring n and z back onto lanes [0,H), where h lives.
        n0 = pltpu.roll(nt, shift=Gl - 2 * H, axis=1)
        z0 = pltpu.roll(rz, shift=Gl - H, axis=1)
        h_new = n0 + z0 * (h - n0)                   # == (1-z)*n + z*h
        # Lanes >= H carry bounded junk (|.| < 1 by construction); it never
        # reaches a real result because rows >= H of whh/wout are zero.
        if total_steps % chunk != 0:                 # mask padded tail steps
            h_new = jnp.where(c * chunk + t < total_steps, h_new, h)
        return h_new

    h = lax.fori_loop(0, chunk, step, h_ref[...],
                      unroll=True if chunk <= 8 else 4)
    h_ref[...] = h

    @pl.when(c == pl.num_programs(0) - 1)
    def _head():
        out_ref[...] = (
            jnp.dot(h.astype(jnp.bfloat16), wout_ref[...],
                    preferred_element_type=jnp.float32)
            + bout_ref[...])


def recognition_rnn(x, w_ih, w_hh, b_ih, b_hh, w_out, b_out,
                    latent_dim, nhidden, chunk_steps=32):
    """RecognitionRNN.forward: x (T, B, obs) -> (qz_mean, qz_logvar)."""
    T, B, obs = x.shape
    H, L = nhidden, latent_dim
    assert 3 * H <= GL and 2 * L <= OP and obs >= 1

    # Sublane-padded batch.  Independent sequences should be stacked here (up
    # to 128+ rows) to fill the MXU M dimension; padding alone only adds zeros.
    BP = max(8, ((B + 7) // 8) * 8)
    CHUNK = min(T, chunk_steps)
    NC = (T + CHUNK - 1) // CHUNK
    TP = NC * CHUNK

    f32, bf16 = jnp.float32, jnp.bfloat16

    def gate(w, g):                # slice gate g (PyTorch order: r, z, n)
        return w[g * H:(g + 1) * H]

    # W_ih^T gate-packed into lanes [0, 3H) of one 128-lane group (f32, VPU).
    wih_p = jnp.pad(
        jnp.concatenate([gate(w_ih, g).T.astype(f32) for g in range(3)], 1),
        ((0, 0), (0, GL - 3 * H)))                               # (obs, GL)

    # W_hh^T gate-packed; rows padded H -> HP with zeros; bf16 MXU operand.
    whh_p = jnp.pad(
        jnp.concatenate([gate(w_hh, g).T.astype(f32) for g in range(3)], 1),
        ((0, HP - H), (0, GL - 3 * H))).astype(bf16)             # (HP, GL)

    # Biases: fold b_ih + b_hh for r and z; keep b_hh(n) separate (it must
    # stay inside the r * (.) term), placed at the n lane group.
    bgi_p = jnp.pad(
        jnp.concatenate([gate(b_ih, 0) + gate(b_hh, 0),
                         gate(b_ih, 1) + gate(b_hh, 1),
                         gate(b_ih, 2)]).astype(f32),
        (0, GL - 3 * H)).reshape(1, GL)
    bhn_p = jnp.pad(gate(b_hh, 2).astype(f32),
                    (2 * H, GL - 3 * H)).reshape(1, GL)

    # Head: transpose, zero-pad rows H -> HP and lanes 2L -> OP; bf16 weight.
    wout_p = jnp.pad(w_out.T.astype(f32),
                     ((0, HP - H), (0, OP - 2 * L))).astype(bf16)
    bout_p = jnp.pad(b_out.astype(f32), (0, OP - 2 * L)).reshape(1, OP)

    # Input: pad time to TP and batch to BP, flatten to (TP*BP, obs) rows.
    xp = jnp.pad(x.astype(f32),
                 ((0, TP - T), (0, BP - B), (0, 0))).reshape(TP * BP, obs)

    kernel = functools.partial(recognition_rnn_kernel,
                               hidden=H, chunk=CHUNK, total_steps=T)

    nbytes = (xp.size * 4 + wih_p.size * 4 + whh_p.size * 2 + bgi_p.size * 4
              + bhn_p.size * 4 + wout_p.size * 2 + bout_p.size * 4
              + BP * OP * 4)
    cost = pl.CostEstimate(
        flops=2 * T * BP * H * 3 * H          # recurrence (MXU)
        + 2 * T * BP * obs * 3 * H            # input projection (VPU)
        + 2 * BP * H * 2 * L,                 # head (MXU)
        transcendentals=3 * T * BP * H,
        bytes_accessed=int(nbytes))

    out = pl.pallas_call(
        kernel,
        out_shape=jax.ShapeDtypeStruct((BP, OP), f32),
        grid=(NC,),
        in_specs=[
            pl.BlockSpec((CHUNK * BP, obs), lambda c: (c, 0)),   # x (streamed)
            pl.BlockSpec((obs, GL), lambda c: (0, 0)),           # W_ih^T
            pl.BlockSpec((HP, GL), lambda c: (0, 0)),            # W_hh^T (bf16)
            pl.BlockSpec((1, GL), lambda c: (0, 0)),             # folded biases
            pl.BlockSpec((1, GL), lambda c: (0, 0)),             # b_hh(n)
            pl.BlockSpec((HP, OP), lambda c: (0, 0)),            # W_out^T (bf16)
            pl.BlockSpec((1, OP), lambda c: (0, 0)),             # b_out
        ],
        out_specs=pl.BlockSpec((BP, OP), lambda c: (0, 0)),
        scratch_shapes=[
            pltpu.VMEM((CHUNK * BP, GL), f32),   # hoisted gi for one chunk
            pltpu.VMEM((BP, HP), f32),           # hidden state (persists)
        ],
        compiler_params=pltpu.CompilerParams(
            dimension_semantics=("arbitrary",)),  # time chunks are a recurrence
        cost_estimate=cost,
    )(xp, wih_p, whh_p, bgi_p, bhn_p, wout_p, bout_p)

    # Lane-dense kernel output -> (mean, logvar) split + batch un-pad here.
    return out[:B, :L], out[:B, L:2 * L]


def reference(x, w_ih, w_hh, b_ih, b_hh, w_out, b_out, latent_dim, nhidden,
              mm_dtype=jnp.float32):
    """Pure-JAX torch.nn.GRU + Linear + chunk(2, -1).

    mm_dtype=bfloat16 mirrors the kernel's bf16 MXU operands (f32 accumulate)
    for a tight numerical comparison; float32 is the exact module semantics.
    """
    T, B, _ = x.shape
    H = nhidden

    def mm(a, b):
        return jnp.dot(a.astype(mm_dtype), b.astype(mm_dtype),
                       preferred_element_type=jnp.float32)

    h = jnp.zeros((B, H), jnp.float32)
    for t in range(T):
        gi = x[t].astype(jnp.float32) @ w_ih.T + b_ih   # kernel keeps this f32
        gh = mm(h, w_hh.T) + b_hh
        r = jax.nn.sigmoid(gi[:, :H] + gh[:, :H])
        z = jax.nn.sigmoid(gi[:, H:2 * H] + gh[:, H:2 * H])
        n = jnp.tanh(gi[:, 2 * H:] + r * gh[:, 2 * H:])
        h = (1.0 - z) * n + z * h
    out = mm(h, w_out.T) + b_out
    return out[:, :latent_dim], out[:, latent_dim:]


if __name__ == "__main__":
    latent_dim, obs_dim, nhidden = 4, 2, 20   # module defaults
    T, B = 8, 2

    key = jax.random.PRNGKey(0)
    ks = jax.random.split(key, 7)
    k = 1.0 / jnp.sqrt(nhidden)

    # GRU params (PyTorch gate order r, z, n), U(-1/sqrt(H), 1/sqrt(H)).
    w_ih = jax.random.uniform(ks[0], (3 * nhidden, obs_dim), jnp.float32, -k, k)
    w_hh = jax.random.uniform(ks[1], (3 * nhidden, nhidden), jnp.float32, -k, k)
    b_ih = jax.random.uniform(ks[2], (3 * nhidden,), jnp.float32, -k, k)
    b_hh = jax.random.uniform(ks[3], (3 * nhidden,), jnp.float32, -k, k)
    # hid2lat Linear params.
    w_out = jax.random.uniform(ks[4], (2 * latent_dim, nhidden), jnp.float32, -k, k)
    b_out = jax.random.uniform(ks[5], (2 * latent_dim,), jnp.float32, -k, k)
    # Input sequence (T, B, obs_dim), PyTorch nn.GRU default layout.
    x = jax.random.normal(ks[6], (T, B, obs_dim), jnp.float32)

    qz_mean, qz_logvar = recognition_rnn(
        x, w_ih, w_hh, b_ih, b_hh, w_out, b_out, latent_dim, nhidden)
    jax.block_until_ready((qz_mean, qz_logvar))

    assert qz_mean.shape == (B, latent_dim)
    assert qz_logvar.shape == (B, latent_dim)

    # Tight check vs a reference that mirrors the kernel's bf16 MXU operands.
    m_bf, v_bf = reference(x, w_ih, w_hh, b_ih, b_hh, w_out, b_out,
                           latent_dim, nhidden, mm_dtype=jnp.bfloat16)
    assert jnp.allclose(qz_mean, m_bf, atol=1e-2, rtol=1e-2)
    assert jnp.allclose(qz_logvar, v_bf, atol=1e-2, rtol=1e-2)

    # Loose check vs exact f32 module semantics (bf16 MXU => relaxed tolerance).
    m_f, v_f = reference(x, w_ih, w_hh, b_ih, b_hh, w_out, b_out,
                         latent_dim, nhidden)
    assert jnp.allclose(qz_mean, m_f, atol=5e-2, rtol=5e-2)
    assert jnp.allclose(qz_logvar, v_f, atol=5e-2, rtol=5e-2)

    print("KERNEL_OK")
</pallas_src>

<mosaic_0001>
module attributes {stable_mosaic.version = 11 : i64} {
  func.func @recognition_rnn_kernel(%arg0: i32, %arg1: memref<64x2xf32, #tpu.memory_space<vmem>>, %arg2: memref<2x128xf32, #tpu.memory_space<vmem>>, %arg3: memref<128x128xbf16, #tpu.memory_space<vmem>>, %arg4: memref<1x128xf32, #tpu.memory_space<vmem>>, %arg5: memref<1x128xf32, #tpu.memory_space<vmem>>, %arg6: memref<128x128xbf16, #tpu.memory_space<vmem>>, %arg7: memref<1x128xf32, #tpu.memory_space<vmem>>, %arg8: memref<8x128xf32, #tpu.memory_space<vmem>>, %arg9: memref<64x128xf32, #tpu.memory_space<vmem>>, %arg10: memref<8x128xf32, #tpu.memory_space<vmem>>) attributes {dimension_semantics = [#tpu.dimension_semantics<arbitrary>], iteration_bounds = array<i64: 1>, scalar_prefetch = 0 : i64, scratch_operands = 2 : i64, tpu.core_type = #tpu.core_type<tc>, window_params = [{transform_indices = @transform_0, window_bounds = array<i64: 64, 2>}, {pipeline_mode = #tpu.pipeline_mode<synchronous>, transform_indices = @transform_1, window_bounds = array<i64: 2, 128>}, {pipeline_mode = #tpu.pipeline_mode<synchronous>, transform_indices = @transform_2, window_bounds = array<i64: 128, 128>}, {pipeline_mode = #tpu.pipeline_mode<synchronous>, transform_indices = @transform_3, window_bounds = array<i64: 1, 128>}, {pipeline_mode = #tpu.pipeline_mode<synchronous>, transform_indices = @transform_4, window_bounds = array<i64: 1, 128>}, {pipeline_mode = #tpu.pipeline_mode<synchronous>, transform_indices = @transform_5, window_bounds = array<i64: 128, 128>}, {pipeline_mode = #tpu.pipeline_mode<synchronous>, transform_indices = @transform_6, window_bounds = array<i64: 1, 128>}, {pipeline_mode = #tpu.pipeline_mode<synchronous>, transform_indices = @transform_7, window_bounds = array<i64: 8, 128>}]} {
    %c0_i32 = arith.constant 0 : i32
    %0 = arith.cmpi eq, %arg0, %c0_i32 : i32
    %1 = arith.extui %0 : i1 to i32
    %c0_i32_0 = arith.constant 0 : i32
    %2 = arith.cmpi ne, %1, %c0_i32_0 : i32
    scf.if %2 {
      %cst_74 = arith.constant 0.000000e+00 : f32
      %203 = vector.broadcast %cst_74 : f32 to vector<8x128xf32>
      %c0_75 = arith.constant 0 : index
      %c0_76 = arith.constant 0 : index
      %204 = vector.load %arg10[%c0_75, %c0_76] : memref<8x128xf32, #tpu.memory_space<vmem>>, vector<8x128xf32>
      tpu.vector_store %arg10[%c0_75, %c0_76], %203 {strides = array<i32>} : memref<8x128xf32, #tpu.memory_space<vmem>>, vector<8x128xf32>,
    } else {
    }
    %c0 = arith.constant 0 : index
    %c0_1 = arith.constant 0 : index
    %3 = vector.load %arg1[%c0, %c0_1] : memref<64x2xf32, #tpu.memory_space<vmem>>, vector<64x1xf32>
    %c0_2 = arith.constant 0 : index
    %c0_3 = arith.constant 0 : index
    %4 = vector.load %arg2[%c0_2, %c0_3] : memref<2x128xf32, #tpu.memory_space<vmem>>, vector<1x128xf32>
    %5 = vector.broadcast %3 : vector<64x1xf32> to vector<64x128xf32>
    %6 = vector.broadcast %4 : vector<1x128xf32> to vector<64x128xf32>
    %7 = arith.mulf %5, %6 : vector<64x128xf32>
    %c0_4 = arith.constant 0 : index
    %c0_5 = arith.constant 0 : index
    %8 = vector.load %arg4[%c0_4, %c0_5] : memref<1x128xf32, #tpu.memory_space<vmem>>, vector<1x128xf32>
    %9 = vector.broadcast %8 : vector<1x128xf32> to vector<64x128xf32>
    %10 = arith.addf %7, %9 : vector<64x128xf32>
    %c0_6 = arith.constant 0 : index
    %c1 = arith.constant 1 : index
    %11 = vector.load %arg1[%c0_6, %c1] : memref<64x2xf32, #tpu.memory_space<vmem>>, vector<64x1xf32>
    %c1_7 = arith.constant 1 : index
    %c0_8 = arith.constant 0 : index
    %12 = vector.load %arg2[%c1_7, %c0_8] : memref<2x128xf32, #tpu.memory_space<vmem>>, vector<1x128xf32>
    %13 = vector.broadcast %11 : vector<64x1xf32> to vector<64x128xf32>
    %14 = vector.broadcast %12 : vector<1x128xf32> to vector<64x128xf32>
    %15 = arith.mulf %13, %14 : vector<64x128xf32>
    %16 = arith.addf %10, %15 : vector<64x128xf32>
    %c0_9 = arith.constant 0 : index
    %c0_10 = arith.constant 0 : index
    %17 = vector.load %arg9[%c0_9, %c0_10] : memref<64x128xf32, #tpu.memory_space<vmem>>, vector<64x128xf32>
    tpu.vector_store %arg9[%c0_9, %c0_10], %16 {strides = array<i32>} : memref<64x128xf32, #tpu.memory_space<vmem>>, vector<64x128xf32>,
    %c0_11 = arith.constant 0 : index
    %c0_12 = arith.constant 0 : index
    %18 = vector.load %arg5[%c0_11, %c0_12] : memref<1x128xf32, #tpu.memory_space<vmem>>, vector<1x128xf32>
    %19 = vector.shape_cast %18 : vector<1x128xf32> to vector<1x128xf32>
    %20 = vector.broadcast %19 : vector<1x128xf32> to vector<8x128xf32>
    %c0_13 = arith.constant 0 : index
    %c0_14 = arith.constant 0 : index
    %21 = vector.load %arg3[%c0_13, %c0_14] : memref<128x128xbf16, #tpu.memory_space<vmem>>, vector<128x128xbf16>
    %c0_15 = arith.constant 0 : index
    %c0_16 = arith.constant 0 : index
    %22 = vector.load %arg10[%c0_15, %c0_16] : memref<8x128xf32, #tpu.memory_space<vmem>>, vector<8x128xf32>
    %c0_i32_17 = arith.constant 0 : i32
    %c8_i32 = arith.constant 8 : i32
    %23 = arith.muli %c0_i32_17, %c8_i32 : i32
    %24 = tpu.assume_multiple %23, 8 : i32
    %25 = arith.index_cast %24 : i32 to index
    %c0_18 = arith.constant 0 : index
    %26 = vector.load %arg9[%25, %c0_18] : memref<64x128xf32, #tpu.memory_space<vmem>>, vector<8x128xf32>
    %27 = arith.truncf %22 : vector<8x128xf32> to vector<8x128xbf16>
    %cst = arith.constant dense<0.000000e+00> : vector<8x128xf32>
    %28 = tpu.matmul %27, %21, %cst {dimension_numbers = #tpu.dot_dimension_numbers<[1], [0], [0], [1], [0, 0, 1, 1], [], []>} : vector<8x128xbf16>, vector<128x128xbf16>, vector<8x128xf32> -> vector<8x128xf32>
    %29 = arith.addf %26, %28 : vector<8x128xf32>
    %30 = arith.negf %29 : vector<8x128xf32>
    %31 = math.exp %30 : vector<8x128xf32>
    %cst_19 = arith.constant 1.000000e+00 : f32
    %32 = vector.broadcast %cst_19 : f32 to vector<8x128xf32>
    %33 = arith.addf %32, %31 : vector<8x128xf32>
    %34 = arith.divf %32, %33 : vector<8x128xf32>
    %c40_i32 = arith.constant 40 : i32
    %35 = tpu.dynamic_rotate %34 by %c40_i32 dim 1 : vector<8x128xf32>, i32 -> vector<8x128xf32>
    %36 = arith.addf %28, %20 : vector<8x128xf32>
    %37 = arith.mulf %35, %36 : vector<8x128xf32>
    %38 = arith.addf %26, %37 : vector<8x128xf32>
    %39 = math.tanh %38 : vector<8x128xf32>
    %c88_i32 = arith.constant 88 : i32
    %40 = tpu.dynamic_rotate %39 by %c88_i32 dim 1 : vector<8x128xf32>, i32 -> vector<8x128xf32>
    %c108_i32 = arith.constant 108 : i32
    %41 = tpu.dynamic_rotate %34 by %c108_i32 dim 1 : vector<8x128xf32>, i32 -> vector<8x128xf32>
    %42 = arith.subf %22, %40 : vector<8x128xf32>
    %43 = arith.mulf %41, %42 : vector<8x128xf32>
    %44 = arith.addf %40, %43 : vector<8x128xf32>
    %c1_i32 = arith.constant 1 : i32
    %c8_i32_20 = arith.constant 8 : i32
    %45 = arith.muli %c1_i32, %c8_i32_20 : i32
    %46 = tpu.assume_multiple %45, 8 : i32
    %47 = arith.index_cast %46 : i32 to index
    %c0_21 = arith.constant 0 : index
    %48 = vector.load %arg9[%47, %c0_21] : memref<64x128xf32, #tpu.memory_space<vmem>>, vector<8x128xf32>
    %49 = arith.truncf %44 : vector<8x128xf32> to vector<8x128xbf16>
    %cst_22 = arith.constant dense<0.000000e+00> : vector<8x128xf32>
    %50 = tpu.matmul %49, %21, %cst_22 {dimension_numbers = #tpu.dot_dimension_numbers<[1], [0], [0], [1], [0, 0, 1, 1], [], []>} : vector<8x128xbf16>, vector<128x128xbf16>, vector<8x128xf32> -> vector<8x128xf32>
    %51 = arith.addf %48, %50 : vector<8x128xf32>
    %52 = arith.negf %51 : vector<8x128xf32>
    %53 = math.exp %52 : vector<8x128xf32>
    %cst_23 = arith.constant 1.000000e+00 : f32
    %54 = vector.broadcast %cst_23 : f32 to vector<8x128xf32>
    %55 = arith.addf %54, %53 : vector<8x128xf32>
    %56 = arith.divf %54, %55 : vector<8x128xf32>
    %c40_i32_24 = arith.constant 40 : i32
    %57 = tpu.dynamic_rotate %56 by %c40_i32_24 dim 1 : vector<8x128xf32>, i32 -> vector<8x128xf32>
    %58 = arith.addf %50, %20 : vector<8x128xf32>
    %59 = arith.mulf %57, %58 : vector<8x128xf32>
    %60 = arith.addf %48, %59 : vector<8x128xf32>
    %61 = math.tanh %60 : vector<8x128xf32>
    %c88_i32_25 = arith.constant 88 : i32
    %62 = tpu.dynamic_rotate %61 by %c88_i32_25 dim 1 : vector<8x128xf32>, i32 -> vector<8x128xf32>
    %c108_i32_26 = arith.constant 108 : i32
    %63 = tpu.dynamic_rotate %56 by %c108_i32_26 dim 1 : vector<8x128xf32>, i32 -> vector<8x128xf32>
    %64 = arith.subf %44, %62 : vector<8x128xf32>
    %65 = arith.mulf %63, %64 : vector<8x128xf32>
    %66 = arith.addf %62, %65 : vector<8x128xf32>
    %c2_i32 = arith.constant 2 : i32
    %c8_i32_27 = arith.constant 8 : i32
    %67 = arith.muli %c2_i32, %c8_i32_27 : i32
    %68 = tpu.assume_multiple %67, 8 : i32
    %69 = arith.index_cast %68 : i32 to index
    %c0_28 = arith.constant 0 : index
    %70 = vector.load %arg9[%69, %c0_28] : memref<64x128xf32, #tpu.memory_space<vmem>>, vector<8x128xf32>
    %71 = arith.truncf %66 : vector<8x128xf32> to vector<8x128xbf16>
    %cst_29 = arith.constant dense<0.000000e+00> : vector<8x128xf32>
    %72 = tpu.matmul %71, %21, %cst_29 {dimension_numbers = #tpu.dot_dimension_numbers<[1], [0], [0], [1], [0, 0, 1, 1], [], []>} : vector<8x128xbf16>, vector<128x128xbf16>, vector<8x128xf32> -> vector<8x128xf32>
    %73 = arith.addf %70, %72 : vector<8x128xf32>
    %74 = arith.negf %73 : vector<8x128xf32>
    %75 = math.exp %74 : vector<8x128xf32>
    %cst_30 = arith.constant 1.000000e+00 : f32
    %76 = vector.broadcast %cst_30 : f32 to vector<8x128xf32>
    %77 = arith.addf %76, %75 : vector<8x128xf32>
    %78 = arith.divf %76, %77 : vector<8x128xf32>
    %c40_i32_31 = arith.constant 40 : i32
    %79 = tpu.dynamic_rotate %78 by %c40_i32_31 dim 1 : vector<8x128xf32>, i32 -> vector<8x128xf32>
    %80 = arith.addf %72, %20 : vector<8x128xf32>
    %81 = arith.mulf %79, %80 : vector<8x128xf32>
    %82 = arith.addf %70, %81 : vector<8x128xf32>
    %83 = math.tanh %82 : vector<8x128xf32>
    %c88_i32_32 = arith.constant 88 : i32
    %84 = tpu.dynamic_rotate %83 by %c88_i32_32 dim 1 : vector<8x128xf32>, i32 -> vector<8x128xf32>
    %c108_i32_33 = arith.constant 108 : i32
    %85 = tpu.dynamic_rotate %78 by %c108_i32_33 dim 1 : vector<8x128xf32>, i32 -> vector<8x128xf32>
    %86 = arith.subf %66, %84 : vector<8x128xf32>
    %87 = arith.mulf %85, %86 : vector<8x128xf32>
    %88 = arith.addf %84, %87 : vector<8x128xf32>
    %c3_i32 = arith.constant 3 : i32
    %c8_i32_34 = arith.constant 8 : i32
    %89 = arith.muli %c3_i32, %c8_i32_34 : i32
    %90 = tpu.assume_multiple %89, 8 : i32
    %91 = arith.index_cast %90 : i32 to index
    %c0_35 = arith.constant 0 : index
    %92 = vector.load %arg9[%91, %c0_35] : memref<64x128xf32, #tpu.memory_space<vmem>>, vector<8x128xf32>
    %93 = arith.truncf %88 : vector<8x128xf32> to vector<8x128xbf16>
    %cst_36 = arith.constant dense<0.000000e+00> : vector<8x128xf32>
    %94 = tpu.matmul %93, %21, %cst_36 {dimension_numbers = #tpu.dot_dimension_numbers<[1], [0], [0], [1], [0, 0, 1, 1], [], []>} : vector<8x128xbf16>, vector<128x128xbf16>, vector<8x128xf32> -> vector<8x128xf32>
    %95 = arith.addf %92, %94 : vector<8x128xf32>
    %96 = arith.negf %95 : vector<8x128xf32>
    %97 = math.exp %96 : vector<8x128xf32>
    %cst_37 = arith.constant 1.000000e+00 : f32
    %98 = vector.broadcast %cst_37 : f32 to vector<8x128xf32>
    %99 = arith.addf %98, %97 : vector<8x128xf32>
    %100 = arith.divf %98, %99 : vector<8x128xf32>
    %c40_i32_38 = arith.constant 40 : i32
    %101 = tpu.dynamic_rotate %100 by %c40_i32_38 dim 1 : vector<8x128xf32>, i32 -> vector<8x128xf32>
    %102 = arith.addf %94, %20 : vector<8x128xf32>
    %103 = arith.mulf %101, %102 : vector<8x128xf32>
    %104 = arith.addf %92, %103 : vector<8x128xf32>
    %105 = math.tanh %104 : vector<8x128xf32>
    %c88_i32_39 = arith.constant 88 : i32
    %106 = tpu.dynamic_rotate %105 by %c88_i32_39 dim 1 : vector<8x128xf32>, i32 -> vector<8x128xf32>
    %c108_i32_40 = arith.constant 108 : i32
    %107 = tpu.dynamic_rotate %100 by %c108_i32_40 dim 1 : vector<8x128xf32>, i32 -> vector<8x128xf32>
    %108 = arith.subf %88, %106 : vector<8x128xf32>
    %109 = arith.mulf %107, %108 : vector<8x128xf32>
    %110 = arith.addf %106, %109 : vector<8x128xf32>
    %c4_i32 = arith.constant 4 : i32
    %c8_i32_41 = arith.constant 8 : i32
    %111 = arith.muli %c4_i32, %c8_i32_41 : i32
    %112 = tpu.assume_multiple %111, 8 : i32
    %113 = arith.index_cast %112 : i32 to index
    %c0_42 = arith.constant 0 : index
    %114 = vector.load %arg9[%113, %c0_42] : memref<64x128xf32, #tpu.memory_space<vmem>>, vector<8x128xf32>
    %115 = arith.truncf %110 : vector<8x128xf32> to vector<8x128xbf16>
    %cst_43 = arith.constant dense<0.000000e+00> : vector<8x128xf32>
    %116 = tpu.matmul %115, %21, %cst_43 {dimension_numbers = #tpu.dot_dimension_numbers<[1], [0], [0], [1], [0, 0, 1, 1], [], []>} : vector<8x128xbf16>, vector<128x128xbf16>, vector<8x128xf32> -> vector<8x128xf32>
    %117 = arith.addf %114, %116 : vector<8x128xf32>
    %118 = arith.negf %117 : vector<8x128xf32>
    %119 = math.exp %118 : vector<8x128xf32>
    %cst_44 = arith.constant 1.000000e+00 : f32
    %120 = vector.broadcast %cst_44 : f32 to vector<8x128xf32>
    %121 = arith.addf %120, %119 : vector<8x128xf32>
    %122 = arith.divf %120, %121 : vector<8x128xf32>
    %c40_i32_45 = arith.constant 40 : i32
    %123 = tpu.dynamic_rotate %122 by %c40_i32_45 dim 1 : vector<8x128xf32>, i32 -> vector<8x128xf32>
    %124 = arith.addf %116, %20 : vector<8x128xf32>
    %125 = arith.mulf %123, %124 : vector<8x128xf32>
    %126 = arith.addf %114, %125 : vector<8x128xf32>
    %127 = math.tanh %126 : vector<8x128xf32>
    %c88_i32_46 = arith.constant 88 : i32
    %128 = tpu.dynamic_rotate %127 by %c88_i32_46 dim 1 : vector<8x128xf32>, i32 -> vector<8x128xf32>
    %c108_i32_47 = arith.constant 108 : i32
    %129 = tpu.dynamic_rotate %122 by %c108_i32_47 dim 1 : vector<8x128xf32>, i32 -> vector<8x128xf32>
    %130 = arith.subf %110, %128 : vector<8x128xf32>
    %131 = arith.mulf %129, %130 : vector<8x128xf32>
    %132 = arith.addf %128, %131 : vector<8x128xf32>
    %c5_i32 = arith.constant 5 : i32
    %c8_i32_48 = arith.constant 8 : i32
    %133 = arith.muli %c5_i32, %c8_i32_48 : i32
    %134 = tpu.assume_multiple %133, 8 : i32
    %135 = arith.index_cast %134 : i32 to index
    %c0_49 = arith.constant 0 : index
    %136 = vector.load %arg9[%135, %c0_49] : memref<64x128xf32, #tpu.memory_space<vmem>>, vector<8x128xf32>
    %137 = arith.truncf %132 : vector<8x128xf32> to vector<8x128xbf16>
    %cst_50 = arith.constant dense<0.000000e+00> : vector<8x128xf32>
    %138 = tpu.matmul %137, %21, %cst_50 {dimension_numbers = #tpu.dot_dimension_numbers<[1], [0], [0], [1], [0, 0, 1, 1], [], []>} : vector<8x128xbf16>, vector<128x128xbf16>, vector<8x128xf32> -> vector<8x128xf32>
    %139 = arith.addf %136, %138 : vector<8x128xf32>
    %140 = arith.negf %139 : vector<8x128xf32>
    %141 = math.exp %140 : vector<8x128xf32>
    %cst_51 = arith.constant 1.000000e+00 : f32
    %142 = vector.broadcast %cst_51 : f32 to vector<8x128xf32>
    %143 = arith.addf %142, %141 : vector<8x128xf32>
    %144 = arith.divf %142, %143 : vector<8x128xf32>
    %c40_i32_52 = arith.constant 40 : i32
    %145 = tpu.dynamic_rotate %144 by %c40_i32_52 dim 1 : vector<8x128xf32>, i32 -> vector<8x128xf32>
    %146 = arith.addf %138, %20 : vector<8x128xf32>
    %147 = arith.mulf %145, %146 : vector<8x128xf32>
    %148 = arith.addf %136, %147 : vector<8x128xf32>
    %149 = math.tanh %148 : vector<8x128xf32>
    %c88_i32_53 = arith.constant 88 : i32
    %150 = tpu.dynamic_rotate %149 by %c88_i32_53 dim 1 : vector<8x128xf32>, i32 -> vector<8x128xf32>
    %c108_i32_54 = arith.constant 108 : i32
    %151 = tpu.dynamic_rotate %144 by %c108_i32_54 dim 1 : vector<8x128xf32>, i32 -> vector<8x128xf32>
    %152 = arith.subf %132, %150 : vector<8x128xf32>
    %153 = arith.mulf %151, %152 : vector<8x128xf32>
    %154 = arith.addf %150, %153 : vector<8x128xf32>
    %c6_i32 = arith.constant 6 : i32
    %c8_i32_55 = arith.constant 8 : i32
    %155 = arith.muli %c6_i32, %c8_i32_55 : i32
    %156 = tpu.assume_multiple %155, 8 : i32
    %157 = arith.index_cast %156 : i32 to index
    %c0_56 = arith.constant 0 : index
    %158 = vector.load %arg9[%157, %c0_56] : memref<64x128xf32, #tpu.memory_space<vmem>>, vector<8x128xf32>
    %159 = arith.truncf %154 : vector<8x128xf32> to vector<8x128xbf16>
    %cst_57 = arith.constant dense<0.000000e+00> : vector<8x128xf32>
    %160 = tpu.matmul %159, %21, %cst_57 {dimension_numbers = #tpu.dot_dimension_numbers<[1], [0], [0], [1], [0, 0, 1, 1], [], []>} : vector<8x128xbf16>, vector<128x128xbf16>, vector<8x128xf32> -> vector<8x128xf32>
    %161 = arith.addf %158, %160 : vector<8x128xf32>
    %162 = arith.negf %161 : vector<8x128xf32>
    %163 = math.exp %162 : vector<8x128xf32>
    %cst_58 = arith.constant 1.000000e+00 : f32
    %164 = vector.broadcast %cst_58 : f32 to vector<8x128xf32>
    %165 = arith.addf %164, %163 : vector<8x128xf32>
    %166 = arith.divf %164, %165 : vector<8x128xf32>
    %c40_i32_59 = arith.constant 40 : i32
    %167 = tpu.dynamic_rotate %166 by %c40_i32_59 dim 1 : vector<8x128xf32>, i32 -> vector<8x128xf32>
    %168 = arith.addf %160, %20 : vector<8x128xf32>
    %169 = arith.mulf %167, %168 : vector<8x128xf32>
    %170 = arith.addf %158, %169 : vector<8x128xf32>
    %171 = math.tanh %170 : vector<8x128xf32>
    %c88_i32_60 = arith.constant 88 : i32
    %172 = tpu.dynamic_rotate %171 by %c88_i32_60 dim 1 : vector<8x128xf32>, i32 -> vector<8x128xf32>
    %c108_i32_61 = arith.constant 108 : i32
    %173 = tpu.dynamic_rotate %166 by %c108_i32_61 dim 1 : vector<8x128xf32>, i32 -> vector<8x128xf32>
    %174 = arith.subf %154, %172 : vector<8x128xf32>
    %175 = arith.mulf %173, %174 : vector<8x128xf32>
    %176 = arith.addf %172, %175 : vector<8x128xf32>
    %c7_i32 = arith.constant 7 : i32
    %c8_i32_62 = arith.constant 8 : i32
    %177 = arith.muli %c7_i32, %c8_i32_62 : i32
    %178 = tpu.assume_multiple %177, 8 : i32
    %179 = arith.index_cast %178 : i32 to index
    %c0_63 = arith.constant 0 : index
    %180 = vector.load %arg9[%179, %c0_63] : memref<64x128xf32, #tpu.memory_space<vmem>>, vector<8x128xf32>
    %181 = arith.truncf %176 : vector<8x128xf32> to vector<8x128xbf16>
    %cst_64 = arith.constant dense<0.000000e+00> : vector<8x128xf32>
    %182 = tpu.matmul %181, %21, %cst_64 {dimension_numbers = #tpu.dot_dimension_numbers<[1], [0], [0], [1], [0, 0, 1, 1], [], []>} : vector<8x128xbf16>, vector<128x128xbf16>, vector<8x128xf32> -> vector<8x128xf32>
    %183 = arith.addf %180, %182 : vector<8x128xf32>
    %184 = arith.negf %183 : vector<8x128xf32>
    %185 = math.exp %184 : vector<8x128xf32>
    %cst_65 = arith.constant 1.000000e+00 : f32
    %186 = vector.broadcast %cst_65 : f32 to vector<8x128xf32>
    %187 = arith.addf %186, %185 : vector<8x128xf32>
    %188 = arith.divf %186, %187 : vector<8x128xf32>
    %c40_i32_66 = arith.constant 40 : i32
    %189 = tpu.dynamic_rotate %188 by %c40_i32_66 dim 1 : vector<8x128xf32>, i32 -> vector<8x128xf32>
    %190 = arith.addf %182, %20 : vector<8x128xf32>
    %191 = arith.mulf %189, %190 : vector<8x128xf32>
    %192 = arith.addf %180, %191 : vector<8x128xf32>
    %193 = math.tanh %192 : vector<8x128xf32>
    %c88_i32_67 = arith.constant 88 : i32
    %194 = tpu.dynamic_rotate %193 by %c88_i32_67 dim 1 : vector<8x128xf32>, i32 -> vector<8x128xf32>
    %c108_i32_68 = arith.constant 108 : i32
    %195 = tpu.dynamic_rotate %188 by %c108_i32_68 dim 1 : vector<8x128xf32>, i32 -> vector<8x128xf32>
    %196 = arith.subf %176, %194 : vector<8x128xf32>
    %197 = arith.mulf %195, %196 : vector<8x128xf32>
    %198 = arith.addf %194, %197 : vector<8x128xf32>
    %c8_i32_69 = arith.constant 8 : i32
    %c0_70 = arith.constant 0 : index
    %c0_71 = arith.constant 0 : index
    %199 = vector.load %arg10[%c0_70, %c0_71] : memref<8x128xf32, #tpu.memory_space<vmem>>, vector<8x128xf32>
    tpu.vector_store %arg10[%c0_70, %c0_71], %198 {strides = array<i32>} : memref<8x128xf32, #tpu.memory_space<vmem>>, vector<8x128xf32>,
    %c0_i32_72 = arith.constant 0 : i32
    %200 = arith.cmpi eq, %arg0, %c0_i32_72 : i32
    %201 = arith.extui %200 : i1 to i32
    %c0_i32_73 = arith.constant 0 : i32
    %202 = arith.cmpi ne, %201, %c0_i32_73 : i32
    scf.if %202 {
      %203 = arith.truncf %198 : vector<8x128xf32> to vector<8x128xbf16>
      %c0_74 = arith.constant 0 : index
      %c0_75 = arith.constant 0 : index
      %204 = vector.load %arg6[%c0_74, %c0_75] : memref<128x128xbf16, #tpu.memory_space<vmem>>, vector<128x128xbf16>
      %cst_76 = arith.constant dense<0.000000e+00> : vector<8x128xf32>
      %205 = tpu.matmul %203, %204, %cst_76 {dimension_numbers = #tpu.dot_dimension_numbers<[1], [0], [0], [1], [0, 0, 1, 1], [], []>} : vector<8x128xbf16>, vector<128x128xbf16>, vector<8x128xf32> -> vector<8x128xf32>
      %c0_77 = arith.constant 0 : index
      %c0_78 = arith.constant 0 : index
      %206 = vector.load %arg7[%c0_77, %c0_78] : memref<1x128xf32, #tpu.memory_space<vmem>>, vector<1x128xf32>
      %207 = vector.broadcast %206 : vector<1x128xf32> to vector<8x128xf32>
      %208 = arith.addf %205, %207 : vector<8x128xf32>
      %c0_79 = arith.constant 0 : index
      %c0_80 = arith.constant 0 : index
      %209 = vector.load %arg8[%c0_79, %c0_80] : memref<8x128xf32, #tpu.memory_space<vmem>>, vector<8x128xf32>
      tpu.vector_store %arg8[%c0_79, %c0_80], %208 {strides = array<i32>} : memref<8x128xf32, #tpu.memory_space<vmem>>, vector<8x128xf32>,
    } else {
    }
    return
  }
  func.func @transform_0(%arg0: i32) -> (i32, i32) {
    %c0_i32 = arith.constant 0 : i32
    %c0_i32_0 = arith.constant 0 : i32
    return %arg0, %c0_i32 : i32, i32
  }
  func.func @transform_1(%arg0: i32) -> (i32, i32) {
    %c0_i32 = arith.constant 0 : i32
    %c0_i32_0 = arith.constant 0 : i32
    %c0_i32_1 = arith.constant 0 : i32
    return %c0_i32, %c0_i32_0 : i32, i32
  }
  func.func @transform_2(%arg0: i32) -> (i32, i32) {
    %c0_i32 = arith.constant 0 : i32
    %c0_i32_0 = arith.constant 0 : i32
    %c0_i32_1 = arith.constant 0 : i32
    return %c0_i32, %c0_i32_0 : i32, i32
  }
  func.func @transform_3(%arg0: i32) -> (i32, i32) {
    %c0_i32 = arith.constant 0 : i32
    %c0_i32_0 = arith.constant 0 : i32
    %c0_i32_1 = arith.constant 0 : i32
    return %c0_i32, %c0_i32_0 : i32, i32
  }
  func.func @transform_4(%arg0: i32) -> (i32, i32) {
    %c0_i32 = arith.constant 0 : i32
    %c0_i32_0 = arith.constant 0 : i32
    %c0_i32_1 = arith.constant 0 : i32
    return %c0_i32, %c0_i32_0 : i32, i32
  }
  func.func @transform_5(%arg0: i32) -> (i32, i32) {
    %c0_i32 = arith.constant 0 : i32
    %c0_i32_0 = arith.constant 0 : i32
    %c0_i32_1 = arith.constant 0 : i32
    return %c0_i32, %c0_i32_0 : i32, i32
  }
  func.func @transform_6(%arg0: i32) -> (i32, i32) {
    %c0_i32 = arith.constant 0 : i32
    %c0_i32_0 = arith.constant 0 : i32
    %c0_i32_1 = arith.constant 0 : i32
    return %c0_i32, %c0_i32_0 : i32, i32
  }
  func.func @transform_7(%arg0: i32) -> (i32, i32) {
    %c0_i32 = arith.constant 0 : i32
    %c0_i32_0 = arith.constant 0 : i32
    %c0_i32_1 = arith.constant 0 : i32
    return %c0_i32, %c0_i32_0 : i32, i32
  }
}

</mosaic_0001>

<llo_original>
// kernel: tpu_custom_call.1
$region0: #{tpu_custom_call.1}
  #allocation0 [shape = 'u32[]', space=smem, size = 0x4, offset = 0x4, fixed_abs, tag = 'smem constant byte address 0x4 - core index']
  #allocation1 [shape = 'u32[72,128]{1,0:T(1,128)}', space=vmem, size = 0x9000, scoped, tag = 'internal scratch']
  #allocation2 [shape = 'f32[64,128]{1,0:T(8,128)}', space=vmem, size = 0x8000, scoped, tag = 'scratch operand']
  #allocation3 [shape = 'f32[8,128]{1,0:T(8,128)}', space=vmem, size = 0x1000, scoped, tag = 'scratch operand']
  %s0 = inlined_call_operand.vmem [shape: f32[64,2], index: 0, kind: input, shape index: {}]
  %s1 = inlined_call_operand.vmem [shape: f32[2,128], index: 1, kind: input, shape index: {}]
  %s2 = inlined_call_operand.vmem [shape: bf16[128,128], index: 2, kind: input, shape index: {}]
  %s3 = inlined_call_operand.vmem [shape: f32[1,128], index: 3, kind: input, shape index: {}]
  %s4 = inlined_call_operand.vmem [shape: f32[1,128], index: 4, kind: input, shape index: {}]
  %s5 = inlined_call_operand.hbm [shape: bf16[128,128], index: 5, kind: input, shape index: {}]
  %s6 = inlined_call_operand.vmem [shape: f32[1,128], index: 6, kind: input, shape index: {}]
  %s7 = inlined_call_operand.hbm [shape: f32[8,128], index: 7, kind: output, shape index: {}]
  %s8 = sld [smem:[#allocation0]]
  $region50: #{tpu_custom_call.1} parent=0
    _
  %s10 = ssub.s32 1, %s8
  %s11 = scalar_select 0, %s10, %s8
  $region1: #{tpu_custom_call.1} parent=0
    #allocation4 [shape = 'u8[32768]{0}', space=vmem, size = 0x8000, scoped, tag = 'input window, operand 5, single buffered']
    #allocation5 [shape = 's32[1]{0}', space=sflag, size = 0x4, scoped, tag = 'scoped memory for tpu_custom_call.1']
    #allocation6 [shape = 's32[1]{0}', space=sflag, size = 0x4, scoped, tag = 'scoped memory for tpu_custom_call.1']
    #allocation7 [shape = 'u8[4096]{0}', space=vmem, size = 0x1000, scoped, tag = 'output window, operand 0, single buffered']
    %12 = vsyncpa [#allocation5], 0
    %13 = vsyncpa [#allocation6], 0
    // Predicated region
    $region2: #{tpu_custom_call.1} parent=1 // pred_check
      _
    $region3: #{tpu_custom_call.1} parent=1 // pred_check_branch
      %15 = sbr.rel (0) target = $region5
    $region4: #{tpu_custom_call.1} parent=1 // pred_region
      _
    $region5: #{tpu_custom_call.1} parent=1 // pred_fallthru
      _
    // Predicated region
    $region6: #{tpu_custom_call.1} parent=1 // pred_check
      _
    $region7: #{tpu_custom_call.1} parent=1 // pred_check_branch
      %17 = sbr.rel (0) target = $region9
    $region8: #{tpu_custom_call.1} parent=1 // pred_region
      _
    $region9: #{tpu_custom_call.1} parent=1 // pred_fallthru
      _
    // Predicated region
    $region10: #{tpu_custom_call.1} parent=1 // pred_check
      _
    $region11: #{tpu_custom_call.1} parent=1 // pred_check_branch
      %19 = sbr.rel (0) target = $region13
    $region12: #{tpu_custom_call.1} parent=1 // pred_region
      _
    $region13: #{tpu_custom_call.1} parent=1 // pred_fallthru
      _
    // Predicated region
    $region14: #{tpu_custom_call.1} parent=1 // pred_check
      _
    $region15: #{tpu_custom_call.1} parent=1 // pred_check_branch
      %21 = sbr.rel (0) target = $region17
    $region16: #{tpu_custom_call.1} parent=1 // pred_region
      _
    $region17: #{tpu_custom_call.1} parent=1 // pred_fallthru
      _
    // Predicated region
    $region18: #{tpu_custom_call.1} parent=1 // pred_check
      _
    $region19: #{tpu_custom_call.1} parent=1 // pred_check_branch
      %23 = sbr.rel (0) target = $region21
    $region20: #{tpu_custom_call.1} parent=1 // pred_region
      _
    $region21: #{tpu_custom_call.1} parent=1 // pred_fallthru
      _
    // Predicated region
    $region22: #{tpu_custom_call.1} parent=1 // pred_check
      _
    $region23: #{tpu_custom_call.1} parent=1 // pred_check_branch
      %25 = sbr.rel (0) target = $region25
    $region24: #{tpu_custom_call.1} parent=1 // pred_region
      %27 = vsyncadd [#allocation5], 0
      %s28 = sshll.u32 %s5, 4
      %s29 = int_to_ptr.hbm [resolvable:$true] %s28
      %s30 = sshll.u32 [#allocation4], 4
      %s31 = int_to_ptr.vmem [resolvable:$true] %s30
      %36 = dma.hbm_to_vmem [thread:$0]  %s29, 1024, %s31, [#allocation5], 64, 64, 4
    $region25: #{tpu_custom_call.1} parent=1 // pred_fallthru
      _
    // Predicated region
    $region26: #{tpu_custom_call.1} parent=1 // pred_check
      _
    $region27: #{tpu_custom_call.1} parent=1 // pred_check_branch
      %38 = sbr.rel (0) target = $region29
    $region28: #{tpu_custom_call.1} parent=1 // pred_region
      _
    $region29: #{tpu_custom_call.1} parent=1 // pred_fallthru
      _
    // Predicated region
    $region30: #{tpu_custom_call.1} parent=1 // pred_check
      _
    $region31: #{tpu_custom_call.1} parent=1 // pred_check_branch
      %40 = sbr.rel (0) target = $region33
    $region32: #{tpu_custom_call.1} parent=1 // pred_region
      %42 = dma.done [#allocation5], 1024
    $region33: #{tpu_custom_call.1} parent=1 // pred_fallthru
      _
    %p43 = scmp.eq.s32.totalorder 0, 0
    // Predicated region
    $region34: #{tpu_custom_call.1} parent=1 // pred_check
      %p44 = pneg %p43
    $region35: #{tpu_custom_call.1} parent=1 // pred_check_branch
      %46 = sbr.rel (%p44) target = $region37
    $region36: #{tpu_custom_call.1} parent=1 // pred_region
      %47 = vst [vmem:[#allocation3] sm:$0xff] 0.0
    $region37: #{tpu_custom_call.1} parent=1 // pred_fallthru
      _
    %v48 = vld [vmem:[%s0] sm:$0xff]
    %v49 = vld [vmem:[%s0 + $0x8] sm:$0xff]
    %v50 = vld [vmem:[%s0 + $0x10] sm:$0xff]
    %v51 = vld [vmem:[%s0 + $0x18] sm:$0xff]
    %v52 = vld [vmem:[%s0 + $0x20] sm:$0xff]
    %v53 = vld [vmem:[%s0 + $0x28] sm:$0xff]
    %v54 = vld [vmem:[%s0 + $0x30] sm:$0xff]
    %v55 = vld [vmem:[%s0 + $0x38] sm:$0xff]
    %v56 = vld [vmem:[%s1] sm:$0x1]
    %58 = vset.pattern.permute.xlu0 0
    %59 = vperm.xlu0 %58, %v48
    %v60 = vpop.permute.xlu0 %59
    %63 = vset.pattern.permute.xlu0 0
    %64 = vperm.xlu0 %63, %v49
    %v65 = vpop.permute.xlu0 %64
    %68 = vset.pattern.permute.xlu0 0
    %69 = vperm.xlu0 %68, %v50
    %v70 = vpop.permute.xlu0 %69
    %73 = vset.pattern.permute.xlu0 0
    %74 = vperm.xlu0 %73, %v51
    %v75 = vpop.permute.xlu0 %74
    %78 = vset.pattern.permute.xlu0 0
    %79 = vperm.xlu0 %78, %v52
    %v80 = vpop.permute.xlu0 %79
    %83 = vset.pattern.permute.xlu0 0
    %84 = vperm.xlu0 %83, %v53
    %v85 = vpop.permute.xlu0 %84
    %88 = vset.pattern.permute.xlu0 0
    %89 = vperm.xlu0 %88, %v54
    %v90 = vpop.permute.xlu0 %89
    %93 = vset.pattern.permute.xlu0 0
    %94 = vperm.xlu0 %93, %v55
    %v95 = vpop.permute.xlu0 %94
    %v97 = vperm.slane %v56, 0
    %v98 = vmul.f32 %v60, %v97
    %v99 = vmul.f32 %v65, %v97
    %v100 = vmul.f32 %v70, %v97
    %v101 = vmul.f32 %v75, %v97
    %v102 = vmul.f32 %v80, %v97
    %v103 = vmul.f32 %v85, %v97
    %v104 = vmul.f32 %v90, %v97
    %v105 = vmul.f32 %v95, %v97
    %v106 = vld [vmem:[%s3] sm:$0x1]
    %v108 = vperm.slane %v106, 0
    %v110 = vadd.f32 %v98, %v108
    %v111 = vadd.f32 %v99, %v108
    %v112 = vadd.f32 %v100, %v108
    %v113 = vadd.f32 %v101, %v108
    %v114 = vadd.f32 %v102, %v108
    %v115 = vadd.f32 %v103, %v108
    %v116 = vadd.f32 %v104, %v108
    %v117 = vadd.f32 %v105, %v108
    %v118 = vld [vmem:[%s1 + $0x1] sm:$0x1]
    %119 = vset.pattern.permute.xlu0 1
    %120 = vperm.xlu0 %119, %v48
    %v121 = vpop.permute.xlu0 %120
    %123 = vset.pattern.permute.xlu0 1
    %124 = vperm.xlu0 %123, %v49
    %v125 = vpop.permute.xlu0 %124
    %127 = vset.pattern.permute.xlu0 1
    %128 = vperm.xlu0 %127, %v50
    %v129 = vpop.permute.xlu0 %128
    %131 = vset.pattern.permute.xlu0 1
    %132 = vperm.xlu0 %131, %v51
    %v133 = vpop.permute.xlu0 %132
    %135 = vset.pattern.permute.xlu0 1
    %136 = vperm.xlu0 %135, %v52
    %v137 = vpop.permute.xlu0 %136
    %139 = vset.pattern.permute.xlu0 1
    %140 = vperm.xlu0 %139, %v53
    %v141 = vpop.permute.xlu0 %140
    %143 = vset.pattern.permute.xlu0 1
    %144 = vperm.xlu0 %143, %v54
    %v145 = vpop.permute.xlu0 %144
    %147 = vset.pattern.permute.xlu0 1
    %148 = vperm.xlu0 %147, %v55
    %v149 = vpop.permute.xlu0 %148
    %v151 = vperm.slane %v118, 0
    %v152 = vmul.f32 %v121, %v151
    %v153 = vmul.f32 %v125, %v151
    %v154 = vmul.f32 %v129, %v151
    %v155 = vmul.f32 %v133, %v151
    %v156 = vmul.f32 %v137, %v151
    %v157 = vmul.f32 %v141, %v151
    %v158 = vmul.f32 %v145, %v151
    %v159 = vmul.f32 %v149, %v151
    %v160 = vadd.f32 %v110, %v152
    %v161 = vadd.f32 %v111, %v153
    %v162 = vadd.f32 %v112, %v154
    %v163 = vadd.f32 %v113, %v155
    %v164 = vadd.f32 %v114, %v156
    %v165 = vadd.f32 %v115, %v157
    %v166 = vadd.f32 %v116, %v158
    %v167 = vadd.f32 %v117, %v159
    %168 = vst [vmem:[#allocation2] sm:$0xff] %v160
    %169 = vst [vmem:[#allocation2 + $0x8] sm:$0xff] %v161
    %170 = vst [vmem:[#allocation2 + $0x10] sm:$0xff] %v162
    %171 = vst [vmem:[#allocation2 + $0x18] sm:$0xff] %v163
    %172 = vst [vmem:[#allocation2 + $0x20] sm:$0xff] %v164
    %173 = vst [vmem:[#allocation2 + $0x28] sm:$0xff] %v165
    %174 = vst [vmem:[#allocation2 + $0x30] sm:$0xff] %v166
    %175 = vst [vmem:[#allocation2 + $0x38] sm:$0xff] %v167
    %v176 = vld [vmem:[%s4] sm:$0x1]
    %v178 = vperm.slane %v176, 0
    %v180 = vld [vmem:[%s2] sm:$0xf]
    %v181 = vld [vmem:[%s2 + $0x4] sm:$0xf]
    %v182 = vld [vmem:[%s2 + $0x8] sm:$0xf]
    %v183 = vld [vmem:[%s2 + $0xc] sm:$0xf]
    %v184 = vld [vmem:[%s2 + $0x10] sm:$0xf]
    %v185 = vld [vmem:[%s2 + $0x14] sm:$0xf]
    %v186 = vld [vmem:[%s2 + $0x18] sm:$0xf]
    %v187 = vld [vmem:[%s2 + $0x1c] sm:$0xf]
    %v188 = vld [vmem:[%s2 + $0x20] sm:$0xf]
    %v189 = vld [vmem:[%s2 + $0x24] sm:$0xf]
    %v190 = vld [vmem:[%s2 + $0x28] sm:$0xf]
    %v191 = vld [vmem:[%s2 + $0x2c] sm:$0xf]
    %v192 = vld [vmem:[%s2 + $0x30] sm:$0xf]
    %v193 = vld [vmem:[%s2 + $0x34] sm:$0xf]
    %v194 = vld [vmem:[%s2 + $0x38] sm:$0xf]
    %v195 = vld [vmem:[%s2 + $0x3c] sm:$0xf]
    %v196 = vld [vmem:[#allocation3] sm:$0xff]
    %v197 = vld [vmem:[#allocation2] sm:$0xff]
    %v198 = vpack.c.bf16 %v196, %v196
    %v215 = vunpack.c.l.b16 %v180
    %v216 = vunpack.c.l.b16 %v181
    %v217 = vunpack.c.l.b16 %v182
    %v218 = vunpack.c.l.b16 %v183
    %v219 = vunpack.c.l.b16 %v184
    %v220 = vunpack.c.l.b16 %v185
    %v221 = vunpack.c.l.b16 %v186
    %v222 = vunpack.c.l.b16 %v187
    %v223 = vunpack.c.l.b16 %v188
    %v224 = vunpack.c.l.b16 %v189
    %v225 = vunpack.c.l.b16 %v190
    %v226 = vunpack.c.l.b16 %v191
    %v227 = vunpack.c.l.b16 %v192
    %v228 = vunpack.c.l.b16 %v193
    %v229 = vunpack.c.l.b16 %v194
    %v230 = vunpack.c.l.b16 %v195
    %v231 = vpack.c.b16 %v216, %v215
    %v232 = vpack.c.b16 %v218, %v217
    %v233 = vpack.c.b16 %v220, %v219
    %v234 = vpack.c.b16 %v222, %v221
    %v235 = vpack.c.b16 %v224, %v223
    %v236 = vpack.c.b16 %v226, %v225
    %v237 = vpack.c.b16 %v228, %v227
    %v238 = vpack.c.b16 %v230, %v229
    %247 = vmatpush.bf16.msra.mxu0 %v238
    %248 = vmatpush.bf16.msra.mxu0 %v237
    %249 = vmatpush.bf16.msra.mxu0 %v236
    %250 = vmatpush.bf16.msra.mxu0 %v235
    %251 = vmatpush.bf16.msra.mxu0 %v234
    %252 = vmatpush.bf16.msra.mxu0 %v233
    %253 = vmatpush.bf16.msra.mxu0 %v232
    %254 = vmatpush.bf16.msra.mxu0 %v231
    %255 = vmatmul.bf16.gmra.mxu0 %v198
    %v256 = vpop.f32.mrf.mxu0
    %v257 = vadd.f32 0.0, %v256
    %v258 = vpop.f32.mrf.mxu0
    %259 = vdwg.mxu0
    %v260 = vadd.f32 %v197, %v257
    %v261 = vxor.u32 %v260, 2147483648
    %v262 = vmul.f32 %v261, 1.442695
    %v263 = vpow.pop %v262
    %v264 = vadd.f32 %v263, 1.0
    %v265 = vrcp.pop %v264
    %v266 = vmul.f32 %v264, %v265
    %v267 = vsub.f32 1.0, %v266
    %v268 = vmul.f32 %v265, %v267
    %v269 = vadd.f32 %v265, %v268
    %vm270 = vweird.f32 %v264
    %vm271 = vweird.f32 %v265
    %vm272 = vmor %vm270, %vm271
    %v273 = vsel %vm272, %v265, %v269
    %v274 = vand.u32 2147483647, %v264
    %vm275 = vcmp.eq.f32.partialorder %v274, 8.507059e+37
    %v276 = vand.u32 %v264, 2147483648
    %v277 = vor.u32 1.1754944e-38, %v276
    %v278 = vsel %vm275, %v277, %v273
    %v279 = vmul.f32 1.0, %v278
    %280 = vrot.lane.b32.xlu0 %v279, 40
    %v281 = vpop.permute.xlu0 %280
    %v282 = vadd.f32 %v257, %v178
    %v283 = vmul.f32 %v281, %v282
    %v284 = vadd.f32 %v197, %v283
    %v285 = vtanh.pop %v284
    %286 = vrot.lane.b32.xlu0 %v285, 88
    %v287 = vpop.permute.xlu0 %286
    %288 = vrot.lane.b32.xlu0 %v279, 108
    %v289 = vpop.permute.xlu0 %288
    %v290 = vsub.f32 %v196, %v287
    %v291 = vmul.f32 %v289, %v290
    %v292 = vadd.f32 %v287, %v291
    %s293 = scalar_lea.vmem [#allocation2], 8
    %v294 = vld [vmem:[%s293] sm:$0xff]
    %v295 = vpack.c.bf16 %v292, %v292
    %296 = vmatpush.bf16.msra.mxu0 %v238
    %297 = vmatpush.bf16.msra.mxu0 %v237
    %298 = vmatpush.bf16.msra.mxu0 %v236
    %299 = vmatpush.bf16.msra.mxu0 %v235
    %300 = vmatpush.bf16.msra.mxu0 %v234
    %301 = vmatpush.bf16.msra.mxu0 %v233
    %302 = vmatpush.bf16.msra.mxu0 %v232
    %303 = vmatpush.bf16.msra.mxu0 %v231
    %304 = vmatmul.bf16.gmra.mxu0 %v295
    %v305 = vpop.f32.mrf.mxu0
    %v306 = vadd.f32 0.0, %v305
    %v307 = vpop.f32.mrf.mxu0
    %308 = vdwg.mxu0
    %v309 = vadd.f32 %v294, %v306
    %v310 = vxor.u32 %v309, 2147483648
    %v311 = vmul.f32 %v310, 1.442695
    %v312 = vpow.pop %v311
    %v313 = vadd.f32 %v312, 1.0
    %v314 = vrcp.pop %v313
    %v315 = vmul.f32 %v313, %v314
    %v316 = vsub.f32 1.0, %v315
    %v317 = vmul.f32 %v314, %v316
    %v318 = vadd.f32 %v314, %v317
    %vm319 = vweird.f32 %v313
    %vm320 = vweird.f32 %v314
    %vm321 = vmor %vm319, %vm320
    %v322 = vsel %vm321, %v314, %v318
    %v323 = vand.u32 2147483647, %v313
    %vm324 = vcmp.eq.f32.partialorder %v323, 8.507059e+37
    %v325 = vand.u32 %v313, 2147483648
    %v326 = vor.u32 1.1754944e-38, %v325
    %v327 = vsel %vm324, %v326, %v322
    %v328 = vmul.f32 1.0, %v327
    %329 = vrot.lane.b32.xlu0 %v328, 40
    %v330 = vpop.permute.xlu0 %329
    %v331 = vadd.f32 %v306, %v178
    %v332 = vmul.f32 %v330, %v331
    %v333 = vadd.f32 %v294, %v332
    %v334 = vtanh.pop %v333
    %335 = vrot.lane.b32.xlu0 %v334, 88
    %v336 = vpop.permute.xlu0 %335
    %337 = vrot.lane.b32.xlu0 %v328, 108
    %v338 = vpop.permute.xlu0 %337
    %v339 = vsub.f32 %v292, %v336
    %v340 = vmul.f32 %v338, %v339
    %v341 = vadd.f32 %v336, %v340
    %s342 = scalar_lea.vmem [#allocation2], 16
    %v343 = vld [vmem:[%s342] sm:$0xff]
    %v344 = vpack.c.bf16 %v341, %v341
    %345 = vmatpush.bf16.msra.mxu0 %v238
    %346 = vmatpush.bf16.msra.mxu0 %v237
    %347 = vmatpush.bf16.msra.mxu0 %v236
    %348 = vmatpush.bf16.msra.mxu0 %v235
    %349 = vmatpush.bf16.msra.mxu0 %v234
    %350 = vmatpush.bf16.msra.mxu0 %v233
    %351 = vmatpush.bf16.msra.mxu0 %v232
    %352 = vmatpush.bf16.msra.mxu0 %v231
    %353 = vmatmul.bf16.gmra.mxu0 %v344
    %v354 = vpop.f32.mrf.mxu0
    %v355 = vadd.f32 0.0, %v354
    %v356 = vpop.f32.mrf.mxu0
    %357 = vdwg.mxu0
    %v358 = vadd.f32 %v343, %v355
    %v359 = vxor.u32 %v358, 2147483648
    %v360 = vmul.f32 %v359, 1.442695
    %v361 = vpow.pop %v360
    %v362 = vadd.f32 %v361, 1.0
    %v363 = vrcp.pop %v362
    %v364 = vmul.f32 %v362, %v363
    %v365 = vsub.f32 1.0, %v364
    %v366 = vmul.f32 %v363, %v365
    %v367 = vadd.f32 %v363, %v366
    %vm368 = vweird.f32 %v362
    %vm369 = vweird.f32 %v363
    %vm370 = vmor %vm368, %vm369
    %v371 = vsel %vm370, %v363, %v367
    %v372 = vand.u32 2147483647, %v362
    %vm373 = vcmp.eq.f32.partialorder %v372, 8.507059e+37
    %v374 = vand.u32 %v362, 2147483648
    %v375 = vor.u32 1.1754944e-38, %v374
    %v376 = vsel %vm373, %v375, %v371
    %v377 = vmul.f32 1.0, %v376
    %378 = vrot.lane.b32.xlu0 %v377, 40
    %v379 = vpop.permute.xlu0 %378
    %v380 = vadd.f32 %v355, %v178
    %v381 = vmul.f32 %v379, %v380
    %v382 = vadd.f32 %v343, %v381
    %v383 = vtanh.pop %v382
    %384 = vrot.lane.b32.xlu0 %v383, 88
    %v385 = vpop.permute.xlu0 %384
    %386 = vrot.lane.b32.xlu0 %v377, 108
    %v387 = vpop.permute.xlu0 %386
    %v388 = vsub.f32 %v341, %v385
    %v389 = vmul.f32 %v387, %v388
    %v390 = vadd.f32 %v385, %v389
    %s391 = scalar_lea.vmem [#allocation2], 24
    %v392 = vld [vmem:[%s391] sm:$0xff]
    %v393 = vpack.c.bf16 %v390, %v390
    %394 = vmatpush.bf16.msra.mxu0 %v238
    %395 = vmatpush.bf16.msra.mxu0 %v237
    %396 = vmatpush.bf16.msra.mxu0 %v236
    %397 = vmatpush.bf16.msra.mxu0 %v235
    %398 = vmatpush.bf16.msra.mxu0 %v234
    %399 = vmatpush.bf16.msra.mxu0 %v233
    %400 = vmatpush.bf16.msra.mxu0 %v232
    %401 = vmatpush.bf16.msra.mxu0 %v231
    %402 = vmatmul.bf16.gmra.mxu0 %v393
    %v403 = vpop.f32.mrf.mxu0
    %v404 = vadd.f32 0.0, %v403
    %v405 = vpop.f32.mrf.mxu0
    %406 = vdwg.mxu0
    %v407 = vadd.f32 %v392, %v404
    %v408 = vxor.u32 %v407, 2147483648
    %v409 = vmul.f32 %v408, 1.442695
    %v410 = vpow.pop %v409
    %v411 = vadd.f32 %v410, 1.0
    %v412 = vrcp.pop %v411
    %v413 = vmul.f32 %v411, %v412
    %v414 = vsub.f32 1.0, %v413
    %v415 = vmul.f32 %v412, %v414
    %v416 = vadd.f32 %v412, %v415
    %vm417 = vweird.f32 %v411
    %vm418 = vweird.f32 %v412
    %vm419 = vmor %vm417, %vm418
    %v420 = vsel %vm419, %v412, %v416
    %v421 = vand.u32 2147483647, %v411
    %vm422 = vcmp.eq.f32.partialorder %v421, 8.507059e+37
    %v423 = vand.u32 %v411, 2147483648
    %v424 = vor.u32 1.1754944e-38, %v423
    %v425 = vsel %vm422, %v424, %v420
    %v426 = vmul.f32 1.0, %v425
    %427 = vrot.lane.b32.xlu0 %v426, 40
    %v428 = vpop.permute.xlu0 %427
    %v429 = vadd.f32 %v404, %v178
    %v430 = vmul.f32 %v428, %v429
    %v431 = vadd.f32 %v392, %v430
    %v432 = vtanh.pop %v431
    %433 = vrot.lane.b32.xlu0 %v432, 88
    %v434 = vpop.permute.xlu0 %433
    %435 = vrot.lane.b32.xlu0 %v426, 108
    %v436 = vpop.permute.xlu0 %435
    %v437 = vsub.f32 %v390, %v434
    %v438 = vmul.f32 %v436, %v437
    %v439 = vadd.f32 %v434, %v438
    %s440 = scalar_lea.vmem [#allocation2], 32
    %v441 = vld [vmem:[%s440] sm:$0xff]
    %v442 = vpack.c.bf16 %v439, %v439
    %443 = vmatpush.bf16.msra.mxu0 %v238
    %444 = vmatpush.bf16.msra.mxu0 %v237
    %445 = vmatpush.bf16.msra.mxu0 %v236
    %446 = vmatpush.bf16.msra.mxu0 %v235
    %447 = vmatpush.bf16.msra.mxu0 %v234
    %448 = vmatpush.bf16.msra.mxu0 %v233
    %449 = vmatpush.bf16.msra.mxu0 %v232
    %450 = vmatpush.bf16.msra.mxu0 %v231
    %451 = vmatmul.bf16.gmra.mxu0 %v442
    %v452 = vpop.f32.mrf.mxu0
    %v453 = vadd.f32 0.0, %v452
    %v454 = vpop.f32.mrf.mxu0
    %455 = vdwg.mxu0
    %v456 = vadd.f32 %v441, %v453
    %v457 = vxor.u32 %v456, 2147483648
    %v458 = vmul.f32 %v457, 1.442695
    %v459 = vpow.pop %v458
    %v460 = vadd.f32 %v459, 1.0
    %v461 = vrcp.pop %v460
    %v462 = vmul.f32 %v460, %v461
    %v463 = vsub.f32 1.0, %v462
    %v464 = vmul.f32 %v461, %v463
    %v465 = vadd.f32 %v461, %v464
    %vm466 = vweird.f32 %v460
    %vm467 = vweird.f32 %v461
    %vm468 = vmor %vm466, %vm467
    %v469 = vsel %vm468, %v461, %v465
    %v470 = vand.u32 2147483647, %v460
    %vm471 = vcmp.eq.f32.partialorder %v470, 8.507059e+37
    %v472 = vand.u32 %v460, 2147483648
    %v473 = vor.u32 1.1754944e-38, %v472
    %v474 = vsel %vm471, %v473, %v469
    %v475 = vmul.f32 1.0, %v474
    %476 = vrot.lane.b32.xlu0 %v475, 40
    %v477 = vpop.permute.xlu0 %476
    %v478 = vadd.f32 %v453, %v178
    %v479 = vmul.f32 %v477, %v478
    %v480 = vadd.f32 %v441, %v479
    %v481 = vtanh.pop %v480
    %482 = vrot.lane.b32.xlu0 %v481, 88
    %v483 = vpop.permute.xlu0 %482
    %484 = vrot.lane.b32.xlu0 %v475, 108
    %v485 = vpop.permute.xlu0 %484
    %v486 = vsub.f32 %v439, %v483
    %v487 = vmul.f32 %v485, %v486
    %v488 = vadd.f32 %v483, %v487
    %s489 = scalar_lea.vmem [#allocation2], 40
    %v490 = vld [vmem:[%s489] sm:$0xff]
    %v491 = vpack.c.bf16 %v488, %v488
    %492 = vmatpush.bf16.msra.mxu0 %v238
    %493 = vmatpush.bf16.msra.mxu0 %v237
    %494 = vmatpush.bf16.msra.mxu0 %v236
    %495 = vmatpush.bf16.msra.mxu0 %v235
    %496 = vmatpush.bf16.msra.mxu0 %v234
    %497 = vmatpush.bf16.msra.mxu0 %v233
    %498 = vmatpush.bf16.msra.mxu0 %v232
    %499 = vmatpush.bf16.msra.mxu0 %v231
    %500 = vmatmul.bf16.gmra.mxu0 %v491
    %v501 = vpop.f32.mrf.mxu0
    %v502 = vadd.f32 0.0, %v501
    %v503 = vpop.f32.mrf.mxu0
    %504 = vdwg.mxu0
    %v505 = vadd.f32 %v490, %v502
    %v506 = vxor.u32 %v505, 2147483648
    %v507 = vmul.f32 %v506, 1.442695
    %v508 = vpow.pop %v507
    %v509 = vadd.f32 %v508, 1.0
    %v510 = vrcp.pop %v509
    %v511 = vmul.f32 %v509, %v510
    %v512 = vsub.f32 1.0, %v511
    %v513 = vmul.f32 %v510, %v512
    %v514 = vadd.f32 %v510, %v513
    %vm515 = vweird.f32 %v509
    %vm516 = vweird.f32 %v510
    %vm517 = vmor %vm515, %vm516
    %v518 = vsel %vm517, %v510, %v514
    %v519 = vand.u32 2147483647, %v509
    %vm520 = vcmp.eq.f32.partialorder %v519, 8.507059e+37
    %v521 = vand.u32 %v509, 2147483648
    %v522 = vor.u32 1.1754944e-38, %v521
    %v523 = vsel %vm520, %v522, %v518
    %v524 = vmul.f32 1.0, %v523
    %525 = vrot.lane.b32.xlu0 %v524, 40
    %v526 = vpop.permute.xlu0 %525
    %v527 = vadd.f32 %v502, %v178
    %v528 = vmul.f32 %v526, %v527
    %v529 = vadd.f32 %v490, %v528
    %v530 = vtanh.pop %v529
    %531 = vrot.lane.b32.xlu0 %v530, 88
    %v532 = vpop.permute.xlu0 %531
    %533 = vrot.lane.b32.xlu0 %v524, 108
    %v534 = vpop.permute.xlu0 %533
    %v535 = vsub.f32 %v488, %v532
    %v536 = vmul.f32 %v534, %v535
    %v537 = vadd.f32 %v532, %v536
    %s538 = scalar_lea.vmem [#allocation2], 48
    %v539 = vld [vmem:[%s538] sm:$0xff]
    %v540 = vpack.c.bf16 %v537, %v537
    %541 = vmatpush.bf16.msra.mxu0 %v238
    %542 = vmatpush.bf16.msra.mxu0 %v237
    %543 = vmatpush.bf16.msra.mxu0 %v236
    %544 = vmatpush.bf16.msra.mxu0 %v235
    %545 = vmatpush.bf16.msra.mxu0 %v234
    %546 = vmatpush.bf16.msra.mxu0 %v233
    %547 = vmatpush.bf16.msra.mxu0 %v232
    %548 = vmatpush.bf16.msra.mxu0 %v231
    %549 = vmatmul.bf16.gmra.mxu0 %v540
    %v550 = vpop.f32.mrf.mxu0
    %v551 = vadd.f32 0.0, %v550
    %v552 = vpop.f32.mrf.mxu0
    %553 = vdwg.mxu0
    %v554 = vadd.f32 %v539, %v551
    %v555 = vxor.u32 %v554, 2147483648
    %v556 = vmul.f32 %v555, 1.442695
    %v557 = vpow.pop %v556
    %v558 = vadd.f32 %v557, 1.0
    %v559 = vrcp.pop %v558
    %v560 = vmul.f32 %v558, %v559
    %v561 = vsub.f32 1.0, %v560
    %v562 = vmul.f32 %v559, %v561
    %v563 = vadd.f32 %v559, %v562
    %vm564 = vweird.f32 %v558
    %vm565 = vweird.f32 %v559
    %vm566 = vmor %vm564, %vm565
    %v567 = vsel %vm566, %v559, %v563
    %v568 = vand.u32 2147483647, %v558
    %vm569 = vcmp.eq.f32.partialorder %v568, 8.507059e+37
    %v570 = vand.u32 %v558, 2147483648
    %v571 = vor.u32 1.1754944e-38, %v570
    %v572 = vsel %vm569, %v571, %v567
    %v573 = vmul.f32 1.0, %v572
    %574 = vrot.lane.b32.xlu0 %v573, 40
    %v575 = vpop.permute.xlu0 %574
    %v576 = vadd.f32 %v551, %v178
    %v577 = vmul.f32 %v575, %v576
    %v578 = vadd.f32 %v539, %v577
    %v579 = vtanh.pop %v578
    %580 = vrot.lane.b32.xlu0 %v579, 88
    %v581 = vpop.permute.xlu0 %580
    %582 = vrot.lane.b32.xlu0 %v573, 108
    %v583 = vpop.permute.xlu0 %582
    %v584 = vsub.f32 %v537, %v581
    %v585 = vmul.f32 %v583, %v584
    %v586 = vadd.f32 %v581, %v585
    %s587 = scalar_lea.vmem [#allocation2], 56
    %v588 = vld [vmem:[%s587] sm:$0xff]
    %v589 = vpack.c.bf16 %v586, %v586
    %590 = vmatpush.bf16.msra.mxu0 %v238
    %591 = vmatpush.bf16.msra.mxu0 %v237
    %592 = vmatpush.bf16.msra.mxu0 %v236
    %593 = vmatpush.bf16.msra.mxu0 %v235
    %594 = vmatpush.bf16.msra.mxu0 %v234
    %595 = vmatpush.bf16.msra.mxu0 %v233
    %596 = vmatpush.bf16.msra.mxu0 %v232
    %597 = vmatpush.bf16.msra.mxu0 %v231
    %598 = vmatmul.bf16.gmra.mxu0 %v589
    %v599 = vpop.f32.mrf.mxu0
    %v600 = vadd.f32 0.0, %v599
    %v601 = vpop.f32.mrf.mxu0
    %602 = vdwg.mxu0
    %v603 = vadd.f32 %v588, %v600
    %v604 = vxor.u32 %v603, 2147483648
    %v605 = vmul.f32 %v604, 1.442695
    %v606 = vpow.pop %v605
    %v607 = vadd.f32 %v606, 1.0
    %v608 = vrcp.pop %v607
    %v609 = vmul.f32 %v607, %v608
    %v610 = vsub.f32 1.0, %v609
    %v611 = vmul.f32 %v608, %v610
    %v612 = vadd.f32 %v608, %v611
    %vm613 = vweird.f32 %v607
    %vm614 = vweird.f32 %v608
    %vm615 = vmor %vm613, %vm614
    %v616 = vsel %vm615, %v608, %v612
    %v617 = vand.u32 2147483647, %v607
    %vm618 = vcmp.eq.f32.partialorder %v617, 8.507059e+37
    %v619 = vand.u32 %v607, 2147483648
    %v620 = vor.u32 1.1754944e-38, %v619
    %v621 = vsel %vm618, %v620, %v616
    %v622 = vmul.f32 1.0, %v621
    %623 = vrot.lane.b32.xlu0 %v622, 40
    %v624 = vpop.permute.xlu0 %623
    %v625 = vadd.f32 %v600, %v178
    %v626 = vmul.f32 %v624, %v625
    %v627 = vadd.f32 %v588, %v626
    %v628 = vtanh.pop %v627
    %629 = vrot.lane.b32.xlu0 %v628, 88
    %v630 = vpop.permute.xlu0 %629
    %631 = vrot.lane.b32.xlu0 %v622, 108
    %v632 = vpop.permute.xlu0 %631
    %v633 = vsub.f32 %v586, %v630
    %v634 = vmul.f32 %v632, %v633
    %v635 = vadd.f32 %v630, %v634
    %636 = vst [vmem:[#allocation3] sm:$0xff] %v635
    // Predicated region
    $region38: #{tpu_custom_call.1} parent=1 // pred_check
      %p637 = pneg %p43
    $region39: #{tpu_custom_call.1} parent=1 // pred_check_branch
      %639 = sbr.rel (%p637) target = $region41
    $region40: #{tpu_custom_call.1} parent=1 // pred_region
      %v640 = vpack.c.bf16 %v635, %v635
      %v641 = vld [vmem:[#allocation4] sm:$0xf]
      %v642 = vld [vmem:[#allocation4 + $0x4] sm:$0xf]
      %v643 = vld [vmem:[#allocation4 + $0x8] sm:$0xf]
      %v644 = vld [vmem:[#allocation4 + $0xc] sm:$0xf]
      %v645 = vld [vmem:[#allocation4 + $0x10] sm:$0xf]
      %v646 = vld [vmem:[#allocation4 + $0x14] sm:$0xf]
      %v647 = vld [vmem:[#allocation4 + $0x18] sm:$0xf]
      %v648 = vld [vmem:[#allocation4 + $0x1c] sm:$0xf]
      %v649 = vld [vmem:[#allocation4 + $0x20] sm:$0xf]
      %v650 = vld [vmem:[#allocation4 + $0x24] sm:$0xf]
      %v651 = vld [vmem:[#allocation4 + $0x28] sm:$0xf]
      %v652 = vld [vmem:[#allocation4 + $0x2c] sm:$0xf]
      %v653 = vld [vmem:[#allocation4 + $0x30] sm:$0xf]
      %v654 = vld [vmem:[#allocation4 + $0x34] sm:$0xf]
      %v655 = vld [vmem:[#allocation4 + $0x38] sm:$0xf]
      %v656 = vld [vmem:[#allocation4 + $0x3c] sm:$0xf]
      %v657 = vld [vmem:[%s6] sm:$0x1]
      %v659 = vperm.slane %v657, 0
      %v677 = vunpack.c.l.b16 %v641
      %v678 = vunpack.c.l.b16 %v642
      %v679 = vunpack.c.l.b16 %v643
      %v680 = vunpack.c.l.b16 %v644
      %v681 = vunpack.c.l.b16 %v645
      %v682 = vunpack.c.l.b16 %v646
      %v683 = vunpack.c.l.b16 %v647
      %v684 = vunpack.c.l.b16 %v648
      %v685 = vunpack.c.l.b16 %v649
      %v686 = vunpack.c.l.b16 %v650
      %v687 = vunpack.c.l.b16 %v651
      %v688 = vunpack.c.l.b16 %v652
      %v689 = vunpack.c.l.b16 %v653
      %v690 = vunpack.c.l.b16 %v654
      %v691 = vunpack.c.l.b16 %v655
      %v692 = vunpack.c.l.b16 %v656
      %v693 = vpack.c.b16 %v678, %v677
      %v694 = vpack.c.b16 %v680, %v679
      %v695 = vpack.c.b16 %v682, %v681
      %v696 = vpack.c.b16 %v684, %v683
      %v697 = vpack.c.b16 %v686, %v685
      %v698 = vpack.c.b16 %v688, %v687
      %v699 = vpack.c.b16 %v690, %v689
      %v700 = vpack.c.b16 %v692, %v691
      %709 = vmatpush.bf16.msra.mxu0 %v700
      %710 = vmatpush.bf16.msra.mxu0 %v699
      %711 = vmatpush.bf16.msra.mxu0 %v698
      %712 = vmatpush.bf16.msra.mxu0 %v697
      %713 = vmatpush.bf16.msra.mxu0 %v696
      %714 = vmatpush.bf16.msra.mxu0 %v695
      %715 = vmatpush.bf16.msra.mxu0 %v694
      %716 = vmatpush.bf16.msra.mxu0 %v693
      %717 = vmatmul.bf16.gmra.mxu0 %v640
      %v718 = vpop.f32.mrf.mxu0
      %v719 = vadd.f32 %v659, %v718
      %v720 = vpop.f32.mrf.mxu0
      %721 = vdwg.mxu0
      %722 = vst [vmem:[#allocation7] sm:$0xff] %v719
    $region41: #{tpu_custom_call.1} parent=1 // pred_fallthru
      _
    // Predicated region
    $region42: #{tpu_custom_call.1} parent=1 // pred_check
      _
    $region43: #{tpu_custom_call.1} parent=1 // pred_check_branch
      %724 = sbr.rel (0) target = $region45
    $region44: #{tpu_custom_call.1} parent=1 // pred_region
      %726 = vsyncadd [#allocation6], 0
      %s728 = sshll.u32 [#allocation7], 4
      %s729 = int_to_ptr.vmem [resolvable:$true] %s728
      %s730 = sshll.u32 %s7, 4
      %s731 = int_to_ptr.hbm [resolvable:$true] %s730
      %733 = dma.vmem_to_hbm [thread:$0]  %s729, 128, %s731, [#allocation6]
    $region45: #{tpu_custom_call.1} parent=1 // pred_fallthru
      _
    // Predicated region
    $region46: #{tpu_custom_call.1} parent=1 // pred_check
      _
    $region47: #{tpu_custom_call.1} parent=1 // pred_check_branch
      %735 = sbr.rel (0) target = $region49
    $region48: #{tpu_custom_call.1} parent=1 // pred_region
      %737 = dma.done [#allocation6], 128
    $region49: #{tpu_custom_call.1} parent=1 // pred_fallthru
      _
    %738 = vsyncpa [#allocation5], 1
    %739 = vsyncpa [#allocation6], 1

</llo_original>
